<compile_context>
chip_gen: v7x
topology: tpu7x:2x2x1
jax: 0.10.0
libtpu: 0.0.40
codegen_flags: <defaults>
</compile_context>

<pallas_src>
import jax
import jax.numpy as jnp
from jax import lax
from jax.experimental import pallas as pl
from jax.experimental.pallas import tpu as pltpu


# ----------------------------------------------------------------------------
# Tiling helpers
# ----------------------------------------------------------------------------
_LANE = 128
_TARGET_BLOCK_BYTES = 2 * 1024 * 1024      # ~2 MiB blocks (v6e / v7x sweet spot)
_MIN_GRID_STEPS = 8                        # enough steps to hide DMAs / feed 2 TCs
_VMEM_LIMIT_BYTES = 48 * 1024 * 1024       # > v5e(16)/v6e-v7x(32) scoped defaults,
                                           # < v7x 64 MiB physical VMEM


def _cdiv(a: int, b: int) -> int:
    return -(-a // b)


def _round_up(x: int, m: int) -> int:
    return _cdiv(x, m) * m


def _lane_tile(hw: int, cap: int = 2048) -> int:
    """Lane (last-dim) tile: multiple of 128, or full hw when hw < 128.

    There is no physical padding any more, so a ragged boundary block only
    costs a few masked VPU lanes (no extra HBM bytes); prefer wide tiles for
    long contiguous DMA rows, but take an exact divisor near the cap if one
    exists (avoids the ragged block entirely)."""
    if hw <= _LANE:
        return hw
    full = _round_up(hw, _LANE)
    if full <= cap:
        return full
    t = cap
    while t >= cap // 2:
        if hw % t == 0:
            return t
        t -= _LANE
    return cap


def _tile_sizes(rows: int, hw: int, itemsize: int):
    sub = max(8, 32 // itemsize)             # sublane quantum: 8 f32 / 16 bf16
    thw = _lane_tile(hw)
    row_cap = max(sub, (_TARGET_BLOCK_BYTES // itemsize) // thw)
    if rows <= row_cap:
        tr = rows                            # full dim (exempt from 8-row rule)
    else:
        tr = max(sub, (row_cap // sub) * sub)

    def steps(tr_, thw_):
        return _cdiv(rows, tr_) * _cdiv(hw, thw_)

    # Guarantee enough grid depth for DMA/compute overlap and megacore sharding.
    while steps(tr, thw) < _MIN_GRID_STEPS:
        if tr >= 2 * sub:
            tr = max(sub, (tr // 2 // sub) * sub)
        elif thw >= 2 * _LANE:
            thw = max(_LANE, (thw // 2 // _LANE) * _LANE)
        else:
            break
    return tr, thw


# ----------------------------------------------------------------------------
# Fused post-conv stage kernels
#   norm (per-channel affine) -> ReLU -> pixel Modulation -> channel Modulation
#   [optionally: + residual -> ReLU, optionally emit the pre-residual lateral]
#
# Layout: activations as (N*C, H*W); per-row f32 columns carry the per-channel
# affine (g, b), the per-sample flag value (f) and the pre-folded channel
# modulation factor (cm); per-pixel Linear(1, HW) params ride the lane axis.
# ----------------------------------------------------------------------------
def _stage_math(x_ref, g_ref, b_ref, f_ref, wp_ref, bp_ref, cm_ref):
    x = x_ref[...].astype(jnp.float32)
    y = x * g_ref[...] + b_ref[...]                          # norm_layer (affine)
    y = jnp.maximum(y, 0.0)                                  # activation_fun = ReLU
    y = y * (1.0 - (f_ref[...] * wp_ref[...] + bp_ref[...]))  # pixel Modulation
    y = y * cm_ref[...]                                      # channel Modulation
    return y


def _stage_kernel(x_ref, g_ref, b_ref, f_ref, wp_ref, bp_ref, cm_ref, o_ref):
    o_ref[...] = _stage_math(x_ref, g_ref, b_ref, f_ref, wp_ref, bp_ref,
                             cm_ref).astype(o_ref.dtype)


def _stage_residual_kernel(x_ref, g_ref, b_ref, f_ref, wp_ref, bp_ref, cm_ref,
                           res_ref, o_ref):
    y = _stage_math(x_ref, g_ref, b_ref, f_ref, wp_ref, bp_ref, cm_ref)
    o_ref[...] = jnp.maximum(y + res_ref[...].astype(jnp.float32),
                             0.0).astype(o_ref.dtype)


def _stage_residual_lateral_kernel(x_ref, g_ref, b_ref, f_ref, wp_ref, bp_ref,
                                   cm_ref, res_ref, lat_ref, o_ref):
    y = _stage_math(x_ref, g_ref, b_ref, f_ref, wp_ref, bp_ref, cm_ref)
    lat_ref[...] = y.astype(lat_ref.dtype)          # laterals_out[-1] (pre-residual)
    o_ref[...] = jnp.maximum(y + res_ref[...].astype(jnp.float32),
                             0.0).astype(o_ref.dtype)


def _fused_post_conv_stage(x_nchw, flag_vals, gamma, beta, w_pix, b_pix, w_ch,
                           b_ch, residual_nchw=None, need_lateral=True):
    """Runs the fused elementwise tail of one conv stage as a single pallas_call."""
    n, c, h, w = x_nchw.shape
    hw = h * w
    rows = n * c
    dt = x_nchw.dtype
    tr, thw = _tile_sizes(rows, hw, jnp.dtype(dt).itemsize)

    f32 = jnp.float32
    fv = flag_vals.astype(f32)                                       # (N,)
    x2 = x_nchw.reshape(rows, hw)                                    # no pad, no copy
    g_row = jnp.broadcast_to(gamma.astype(f32)[None, :], (n, c)).reshape(rows, 1)
    b_row = jnp.broadcast_to(beta.astype(f32)[None, :], (n, c)).reshape(rows, 1)
    f_row = jnp.broadcast_to(fv[:, None], (n, c)).reshape(rows, 1)
    cm_row = (1.0 - (fv[:, None] * w_ch.astype(f32)[None, :]
                     + b_ch.astype(f32)[None, :])).reshape(rows, 1)
    wp2 = w_pix.astype(f32).reshape(1, hw)
    bp2 = b_pix.astype(f32).reshape(1, hw)

    grid = (_cdiv(rows, tr), _cdiv(hw, thw))

    big_spec = pl.BlockSpec((tr, thw), lambda i, j: (i, j))   # activations / outputs
    row_spec = pl.BlockSpec((tr, 1), lambda i, j: (i, 0))     # per-row f32 columns
    pix_spec = pl.BlockSpec((1, thw), lambda i, j: (0, j))    # per-pixel f32 rows

    in_specs = [big_spec, row_spec, row_spec, row_spec, pix_spec, pix_spec, row_spec]
    operands = [x2, g_row, b_row, f_row, wp2, bp2, cm_row]

    if residual_nchw is None:
        kernel = _stage_kernel
        out_shape = jax.ShapeDtypeStruct((rows, hw), dt)
        out_specs = big_spec
    else:
        in_specs = in_specs + [big_spec]
        operands = operands + [residual_nchw.reshape(rows, hw)]
        if need_lateral:
            kernel = _stage_residual_lateral_kernel
            out_shape = (jax.ShapeDtypeStruct((rows, hw), dt),   # pre-residual lateral
                         jax.ShapeDtypeStruct((rows, hw), dt))   # final block output
            out_specs = (big_spec, big_spec)
        else:
            kernel = _stage_residual_kernel
            out_shape = jax.ShapeDtypeStruct((rows, hw), dt)
            out_specs = big_spec

    result = pl.pallas_call(
        kernel,
        out_shape=out_shape,
        grid_spec=pltpu.PrefetchScalarGridSpec(
            num_scalar_prefetch=0,
            grid=grid,
            in_specs=in_specs,
            out_specs=out_specs,
        ),
        compiler_params=pltpu.CompilerParams(
            # Pure elementwise -> every grid axis independent (megacore / 2-TC).
            dimension_semantics=("parallel", "parallel"),
            vmem_limit_bytes=_VMEM_LIMIT_BYTES,
        ),
    )(*operands)

    if residual_nchw is None:
        return result.reshape(n, c, h, w)
    if need_lateral:
        lat, out = result
        return lat.reshape(n, c, h, w), out.reshape(n, c, h, w)
    return None, result.reshape(n, c, h, w)


# ----------------------------------------------------------------------------
# BasicBlockBU forward
# ----------------------------------------------------------------------------
def _conv3x3_same(x, w):
    # TODO(synk): shared.conv1/conv2 (3x3 convs) are dispatched to XLA; a Pallas
    # im2col+MXU conv with _stage_math fused into the epilogue would remove one
    # activation write+read per stage for production channel counts.
    return lax.conv_general_dilated(
        x, w, window_strides=(1, 1), padding="SAME",
        dimension_numbers=("NCHW", "OIHW", "NCHW"))


def basic_block_bu_forward(x, flag, params, emit_final_lateral=True):
    """BasicBlockBU.forward for FlagAt.SF & is_bu2, laterals_in=None,
    downsample=None, orig_relus=True. Returns (out, laterals_out) like the
    PyTorch module. Fully jittable (task selection is done on-device)."""
    task = jnp.argmax(flag[0])                 # flag_to_task (on-device, no int())
    flag_vals = jnp.take(flag, task, axis=1)   # per-sample flag value, shape (N,)

    def task_row(p):                           # per-task parameter gather on-device
        return lax.dynamic_index_in_dim(p, task, axis=0, keepdims=False)

    laterals_out = [x]
    inp = x

    raw1 = _conv3x3_same(x, params["conv1_w"])
    h = _fused_post_conv_stage(
        raw1, flag_vals,
        params["norm1_gamma"], params["norm1_beta"],
        task_row(params["pix1_w"]), task_row(params["pix1_b"]),
        task_row(params["ch1_w"]), task_row(params["ch1_b"]))
    laterals_out.append(h)

    raw2 = _conv3x3_same(h, params["conv2_w"])
    lat3, out = _fused_post_conv_stage(
        raw2, flag_vals,
        params["norm2_gamma"], params["norm2_beta"],
        task_row(params["pix2_w"]), task_row(params["pix2_b"]),
        task_row(params["ch2_w"]), task_row(params["ch2_b"]),
        residual_nchw=inp, need_lateral=emit_final_lateral)
    laterals_out.append(lat3 if emit_final_lateral else out)
    return out, laterals_out


# ----------------------------------------------------------------------------
# Pure-JAX reference (mirrors the PyTorch forward)
# ----------------------------------------------------------------------------
def _reference_forward(x, flag, params):
    task = int(jnp.argmax(flag[0]))
    fv = flag[:, task]
    n, c, h, w = x.shape

    def norm(t, g, b):
        return t * g[None, :, None, None] + b[None, :, None, None]

    def pixmod(t, wt, bt):
        emb = (fv[:, None] * wt[None, :] + bt[None, :]).reshape(n, 1, h, w)
        return t * (1 - emb)

    def chmod(t, wt, bt):
        emb = fv[:, None] * wt[None, :] + bt[None, :]
        return t * (1 - emb[:, :, None, None])

    lats = [x]
    inp = x
    t = jnp.maximum(norm(_conv3x3_same(x, params["conv1_w"]),
                         params["norm1_gamma"], params["norm1_beta"]), 0)
    t = chmod(pixmod(t, params["pix1_w"][task], params["pix1_b"][task]),
              params["ch1_w"][task], params["ch1_b"][task])
    lats.append(t)
    t2 = jnp.maximum(norm(_conv3x3_same(t, params["conv2_w"]),
                          params["norm2_gamma"], params["norm2_beta"]), 0)
    t2 = chmod(pixmod(t2, params["pix2_w"][task], params["pix2_b"][task]),
               params["ch2_w"][task], params["ch2_b"][task])
    lats.append(t2)
    out = jnp.maximum(t2 + inp, 0)
    return out, lats


if __name__ == "__main__":
    key = jax.random.PRNGKey(0)
    ks = jax.random.split(key, 16)

    N, C, H, W = 2, 4, 16, 16
    NTASKS = 2
    HW = H * W
    dt = jnp.float32

    x = jax.random.normal(ks[0], (N, C, H, W), dtype=dt)

    # flag [B, S]: single active task column (flag_to_task -> argmax), per-sample value.
    task_idx = 1
    flag = jnp.zeros((N, NTASKS), dtype=dt).at[:, task_idx].set(
        jnp.array([0.7, 1.3], dtype=dt))

    params = {
        "conv1_w": jax.random.normal(ks[1], (C, C, 3, 3), dtype=dt) * 0.2,
        "conv2_w": jax.random.normal(ks[2], (C, C, 3, 3), dtype=dt) * 0.2,
        "norm1_gamma": 1.0 + 0.1 * jax.random.normal(ks[3], (C,), dtype=dt),
        "norm1_beta": 0.1 * jax.random.normal(ks[4], (C,), dtype=dt),
        "norm2_gamma": 1.0 + 0.1 * jax.random.normal(ks[5], (C,), dtype=dt),
        "norm2_beta": 0.1 * jax.random.normal(ks[6], (C,), dtype=dt),
        # Modulation task-embedding Linear(1, prod) params, stacked over tasks.
        "pix1_w": 0.1 * jax.random.normal(ks[7], (NTASKS, HW), dtype=dt),
        "pix1_b": 0.1 * jax.random.normal(ks[8], (NTASKS, HW), dtype=dt),
        "ch1_w": 0.1 * jax.random.normal(ks[9], (NTASKS, C), dtype=dt),
        "ch1_b": 0.1 * jax.random.normal(ks[10], (NTASKS, C), dtype=dt),
        "pix2_w": 0.1 * jax.random.normal(ks[11], (NTASKS, HW), dtype=dt),
        "pix2_b": 0.1 * jax.random.normal(ks[12], (NTASKS, HW), dtype=dt),
        "ch2_w": 0.1 * jax.random.normal(ks[13], (NTASKS, C), dtype=dt),
        "ch2_b": 0.1 * jax.random.normal(ks[14], (NTASKS, C), dtype=dt),
    }

    fwd = jax.jit(basic_block_bu_forward)
    out, laterals = fwd(x, flag, params)
    out = jax.block_until_ready(out)

    ref_out, ref_lats = _reference_forward(x, flag, params)

    assert out.shape == (N, C, H, W)
    assert jnp.allclose(out, ref_out, atol=1e-5, rtol=1e-5)
    for got, want in zip(laterals, ref_lats):
        assert got.shape == want.shape
        assert jnp.allclose(got, want, atol=1e-5, rtol=1e-5)

    print("KERNEL_OK")
</pallas_src>

<mosaic_0001>
module attributes {stable_mosaic.version = 11 : i64} {
  func.func @_stage_kernel(%arg0: i32, %arg1: i32, %arg2: memref<8x128xf32, #tpu.memory_space<vmem>>, %arg3: memref<8x1xf32, #tpu.memory_space<vmem>>, %arg4: memref<8x1xf32, #tpu.memory_space<vmem>>, %arg5: memref<8x1xf32, #tpu.memory_space<vmem>>, %arg6: memref<1x128xf32, #tpu.memory_space<vmem>>, %arg7: memref<1x128xf32, #tpu.memory_space<vmem>>, %arg8: memref<8x1xf32, #tpu.memory_space<vmem>>, %arg9: memref<8x128xf32, #tpu.memory_space<vmem>>) attributes {dimension_semantics = [#tpu.dimension_semantics<parallel>, #tpu.dimension_semantics<parallel>], iteration_bounds = array<i64: 1, 2>, scalar_prefetch = 0 : i64, scratch_operands = 0 : i64, tpu.core_type = #tpu.core_type<tc>, window_params = [{transform_indices = @transform_0, window_bounds = array<i64: 8, 128>}, {transform_indices = @transform_1, window_bounds = array<i64: 8, 1>}, {transform_indices = @transform_2, window_bounds = array<i64: 8, 1>}, {transform_indices = @transform_3, window_bounds = array<i64: 8, 1>}, {transform_indices = @transform_4, window_bounds = array<i64: 1, 128>}, {transform_indices = @transform_5, window_bounds = array<i64: 1, 128>}, {transform_indices = @transform_6, window_bounds = array<i64: 8, 1>}, {transform_indices = @transform_7, window_bounds = array<i64: 8, 128>}]} {
    %c0 = arith.constant 0 : index
    %c0_0 = arith.constant 0 : index
    %0 = vector.load %arg2[%c0, %c0_0] : memref<8x128xf32, #tpu.memory_space<vmem>>, vector<8x128xf32>
    %c0_1 = arith.constant 0 : index
    %c0_2 = arith.constant 0 : index
    %1 = vector.load %arg3[%c0_1, %c0_2] : memref<8x1xf32, #tpu.memory_space<vmem>>, vector<8x1xf32>
    %2 = vector.broadcast %1 : vector<8x1xf32> to vector<8x128xf32>
    %3 = arith.mulf %0, %2 : vector<8x128xf32>
    %c0_3 = arith.constant 0 : index
    %c0_4 = arith.constant 0 : index
    %4 = vector.load %arg4[%c0_3, %c0_4] : memref<8x1xf32, #tpu.memory_space<vmem>>, vector<8x1xf32>
    %5 = vector.broadcast %4 : vector<8x1xf32> to vector<8x128xf32>
    %6 = arith.addf %3, %5 : vector<8x128xf32>
    %cst = arith.constant 0.000000e+00 : f32
    %7 = vector.broadcast %cst : f32 to vector<8x128xf32>
    %8 = arith.maximumf %6, %7 : vector<8x128xf32>
    %c0_5 = arith.constant 0 : index
    %c0_6 = arith.constant 0 : index
    %9 = vector.load %arg5[%c0_5, %c0_6] : memref<8x1xf32, #tpu.memory_space<vmem>>, vector<8x1xf32>
    %c0_7 = arith.constant 0 : index
    %c0_8 = arith.constant 0 : index
    %10 = vector.load %arg6[%c0_7, %c0_8] : memref<1x128xf32, #tpu.memory_space<vmem>>, vector<1x128xf32>
    %11 = vector.broadcast %9 : vector<8x1xf32> to vector<8x128xf32>
    %12 = vector.broadcast %10 : vector<1x128xf32> to vector<8x128xf32>
    %13 = arith.mulf %11, %12 : vector<8x128xf32>
    %c0_9 = arith.constant 0 : index
    %c0_10 = arith.constant 0 : index
    %14 = vector.load %arg7[%c0_9, %c0_10] : memref<1x128xf32, #tpu.memory_space<vmem>>, vector<1x128xf32>
    %15 = vector.broadcast %14 : vector<1x128xf32> to vector<8x128xf32>
    %16 = arith.addf %13, %15 : vector<8x128xf32>
    %cst_11 = arith.constant 1.000000e+00 : f32
    %17 = vector.broadcast %cst_11 : f32 to vector<8x128xf32>
    %18 = arith.subf %17, %16 : vector<8x128xf32>
    %19 = arith.mulf %8, %18 : vector<8x128xf32>
    %c0_12 = arith.constant 0 : index
    %c0_13 = arith.constant 0 : index
    %20 = vector.load %arg8[%c0_12, %c0_13] : memref<8x1xf32, #tpu.memory_space<vmem>>, vector<8x1xf32>
    %21 = vector.broadcast %20 : vector<8x1xf32> to vector<8x128xf32>
    %22 = arith.mulf %19, %21 : vector<8x128xf32>
    %c0_14 = arith.constant 0 : index
    %c0_15 = arith.constant 0 : index
    %23 = vector.load %arg9[%c0_14, %c0_15] : memref<8x128xf32, #tpu.memory_space<vmem>>, vector<8x128xf32>
    tpu.vector_store %arg9[%c0_14, %c0_15], %22 {strides = array<i32>} : memref<8x128xf32, #tpu.memory_space<vmem>>, vector<8x128xf32>,
    return
  }
  func.func @transform_0(%arg0: i32, %arg1: i32) -> (i32, i32) {
    %c0_i32 = arith.constant 0 : i32
    return %arg0, %arg1 : i32, i32
  }
  func.func @transform_1(%arg0: i32, %arg1: i32) -> (i32, i32) {
    %c0_i32 = arith.constant 0 : i32
    %c0_i32_0 = arith.constant 0 : i32
    return %arg0, %c0_i32 : i32, i32
  }
  func.func @transform_2(%arg0: i32, %arg1: i32) -> (i32, i32) {
    %c0_i32 = arith.constant 0 : i32
    %c0_i32_0 = arith.constant 0 : i32
    return %arg0, %c0_i32 : i32, i32
  }
  func.func @transform_3(%arg0: i32, %arg1: i32) -> (i32, i32) {
    %c0_i32 = arith.constant 0 : i32
    %c0_i32_0 = arith.constant 0 : i32
    return %arg0, %c0_i32 : i32, i32
  }
  func.func @transform_4(%arg0: i32, %arg1: i32) -> (i32, i32) {
    %c0_i32 = arith.constant 0 : i32
    %c0_i32_0 = arith.constant 0 : i32
    return %c0_i32, %arg1 : i32, i32
  }
  func.func @transform_5(%arg0: i32, %arg1: i32) -> (i32, i32) {
    %c0_i32 = arith.constant 0 : i32
    %c0_i32_0 = arith.constant 0 : i32
    return %c0_i32, %arg1 : i32, i32
  }
  func.func @transform_6(%arg0: i32, %arg1: i32) -> (i32, i32) {
    %c0_i32 = arith.constant 0 : i32
    %c0_i32_0 = arith.constant 0 : i32
    return %arg0, %c0_i32 : i32, i32
  }
  func.func @transform_7(%arg0: i32, %arg1: i32) -> (i32, i32) {
    %c0_i32 = arith.constant 0 : i32
    return %arg0, %arg1 : i32, i32
  }
}

module attributes {stable_mosaic.version = 11 : i64} {
  func.func @_stage_residual_lateral_kernel(%arg0: i32, %arg1: i32, %arg2: memref<8x128xf32, #tpu.memory_space<vmem>>, %arg3: memref<8x1xf32, #tpu.memory_space<vmem>>, %arg4: memref<8x1xf32, #tpu.memory_space<vmem>>, %arg5: memref<8x1xf32, #tpu.memory_space<vmem>>, %arg6: memref<1x128xf32, #tpu.memory_space<vmem>>, %arg7: memref<1x128xf32, #tpu.memory_space<vmem>>, %arg8: memref<8x1xf32, #tpu.memory_space<vmem>>, %arg9: memref<8x128xf32, #tpu.memory_space<vmem>>, %arg10: memref<8x128xf32, #tpu.memory_space<vmem>>, %arg11: memref<8x128xf32, #tpu.memory_space<vmem>>) attributes {dimension_semantics = [#tpu.dimension_semantics<parallel>, #tpu.dimension_semantics<parallel>], iteration_bounds = array<i64: 1, 2>, scalar_prefetch = 0 : i64, scratch_operands = 0 : i64, tpu.core_type = #tpu.core_type<tc>, window_params = [{transform_indices = @transform_0, window_bounds = array<i64: 8, 128>}, {transform_indices = @transform_1, window_bounds = array<i64: 8, 1>}, {transform_indices = @transform_2, window_bounds = array<i64: 8, 1>}, {transform_indices = @transform_3, window_bounds = array<i64: 8, 1>}, {transform_indices = @transform_4, window_bounds = array<i64: 1, 128>}, {transform_indices = @transform_5, window_bounds = array<i64: 1, 128>}, {transform_indices = @transform_6, window_bounds = array<i64: 8, 1>}, {transform_indices = @transform_7, window_bounds = array<i64: 8, 128>}, {transform_indices = @transform_8, window_bounds = array<i64: 8, 128>}, {transform_indices = @transform_9, window_bounds = array<i64: 8, 128>}]} {
    %c0 = arith.constant 0 : index
    %c0_0 = arith.constant 0 : index
    %0 = vector.load %arg2[%c0, %c0_0] : memref<8x128xf32, #tpu.memory_space<vmem>>, vector<8x128xf32>
    %c0_1 = arith.constant 0 : index
    %c0_2 = arith.constant 0 : index
    %1 = vector.load %arg3[%c0_1, %c0_2] : memref<8x1xf32, #tpu.memory_space<vmem>>, vector<8x1xf32>
    %2 = vector.broadcast %1 : vector<8x1xf32> to vector<8x128xf32>
    %3 = arith.mulf %0, %2 : vector<8x128xf32>
    %c0_3 = arith.constant 0 : index
    %c0_4 = arith.constant 0 : index
    %4 = vector.load %arg4[%c0_3, %c0_4] : memref<8x1xf32, #tpu.memory_space<vmem>>, vector<8x1xf32>
    %5 = vector.broadcast %4 : vector<8x1xf32> to vector<8x128xf32>
    %6 = arith.addf %3, %5 : vector<8x128xf32>
    %cst = arith.constant 0.000000e+00 : f32
    %7 = vector.broadcast %cst : f32 to vector<8x128xf32>
    %8 = arith.maximumf %6, %7 : vector<8x128xf32>
    %c0_5 = arith.constant 0 : index
    %c0_6 = arith.constant 0 : index
    %9 = vector.load %arg5[%c0_5, %c0_6] : memref<8x1xf32, #tpu.memory_space<vmem>>, vector<8x1xf32>
    %c0_7 = arith.constant 0 : index
    %c0_8 = arith.constant 0 : index
    %10 = vector.load %arg6[%c0_7, %c0_8] : memref<1x128xf32, #tpu.memory_space<vmem>>, vector<1x128xf32>
    %11 = vector.broadcast %9 : vector<8x1xf32> to vector<8x128xf32>
    %12 = vector.broadcast %10 : vector<1x128xf32> to vector<8x128xf32>
    %13 = arith.mulf %11, %12 : vector<8x128xf32>
    %c0_9 = arith.constant 0 : index
    %c0_10 = arith.constant 0 : index
    %14 = vector.load %arg7[%c0_9, %c0_10] : memref<1x128xf32, #tpu.memory_space<vmem>>, vector<1x128xf32>
    %15 = vector.broadcast %14 : vector<1x128xf32> to vector<8x128xf32>
    %16 = arith.addf %13, %15 : vector<8x128xf32>
    %cst_11 = arith.constant 1.000000e+00 : f32
    %17 = vector.broadcast %cst_11 : f32 to vector<8x128xf32>
    %18 = arith.subf %17, %16 : vector<8x128xf32>
    %19 = arith.mulf %8, %18 : vector<8x128xf32>
    %c0_12 = arith.constant 0 : index
    %c0_13 = arith.constant 0 : index
    %20 = vector.load %arg8[%c0_12, %c0_13] : memref<8x1xf32, #tpu.memory_space<vmem>>, vector<8x1xf32>
    %21 = vector.broadcast %20 : vector<8x1xf32> to vector<8x128xf32>
    %22 = arith.mulf %19, %21 : vector<8x128xf32>
    %c0_14 = arith.constant 0 : index
    %c0_15 = arith.constant 0 : index
    %23 = vector.load %arg10[%c0_14, %c0_15] : memref<8x128xf32, #tpu.memory_space<vmem>>, vector<8x128xf32>
    tpu.vector_store %arg10[%c0_14, %c0_15], %22 {strides = array<i32>} : memref<8x128xf32, #tpu.memory_space<vmem>>, vector<8x128xf32>,
    %c0_16 = arith.constant 0 : index
    %c0_17 = arith.constant 0 : index
    %24 = vector.load %arg9[%c0_16, %c0_17] : memref<8x128xf32, #tpu.memory_space<vmem>>, vector<8x128xf32>
    %25 = arith.addf %22, %24 : vector<8x128xf32>
    %cst_18 = arith.constant 0.000000e+00 : f32
    %26 = vector.broadcast %cst_18 : f32 to vector<8x128xf32>
    %27 = arith.maximumf %25, %26 : vector<8x128xf32>
    %c0_19 = arith.constant 0 : index
    %c0_20 = arith.constant 0 : index
    %28 = vector.load %arg11[%c0_19, %c0_20] : memref<8x128xf32, #tpu.memory_space<vmem>>, vector<8x128xf32>
    tpu.vector_store %arg11[%c0_19, %c0_20], %27 {strides = array<i32>} : memref<8x128xf32, #tpu.memory_space<vmem>>, vector<8x128xf32>,
    return
  }
  func.func @transform_0(%arg0: i32, %arg1: i32) -> (i32, i32) {
    %c0_i32 = arith.constant 0 : i32
    return %arg0, %arg1 : i32, i32
  }
  func.func @transform_1(%arg0: i32, %arg1: i32) -> (i32, i32) {
    %c0_i32 = arith.constant 0 : i32
    %c0_i32_0 = arith.constant 0 : i32
    return %arg0, %c0_i32 : i32, i32
  }
  func.func @transform_2(%arg0: i32, %arg1: i32) -> (i32, i32) {
    %c0_i32 = arith.constant 0 : i32
    %c0_i32_0 = arith.constant 0 : i32
    return %arg0, %c0_i32 : i32, i32
  }
  func.func @transform_3(%arg0: i32, %arg1: i32) -> (i32, i32) {
    %c0_i32 = arith.constant 0 : i32
    %c0_i32_0 = arith.constant 0 : i32
    return %arg0, %c0_i32 : i32, i32
  }
  func.func @transform_4(%arg0: i32, %arg1: i32) -> (i32, i32) {
    %c0_i32 = arith.constant 0 : i32
    %c0_i32_0 = arith.constant 0 : i32
    return %c0_i32, %arg1 : i32, i32
  }
  func.func @transform_5(%arg0: i32, %arg1: i32) -> (i32, i32) {
    %c0_i32 = arith.constant 0 : i32
    %c0_i32_0 = arith.constant 0 : i32
    return %c0_i32, %arg1 : i32, i32
  }
  func.func @transform_6(%arg0: i32, %arg1: i32) -> (i32, i32) {
    %c0_i32 = arith.constant 0 : i32
    %c0_i32_0 = arith.constant 0 : i32
    return %arg0, %c0_i32 : i32, i32
  }
  func.func @transform_7(%arg0: i32, %arg1: i32) -> (i32, i32) {
    %c0_i32 = arith.constant 0 : i32
    return %arg0, %arg1 : i32, i32
  }
  func.func @transform_8(%arg0: i32, %arg1: i32) -> (i32, i32) {
    %c0_i32 = arith.constant 0 : i32
    return %arg0, %arg1 : i32, i32
  }
  func.func @transform_9(%arg0: i32, %arg1: i32) -> (i32, i32) {
    %c0_i32 = arith.constant 0 : i32
    return %arg0, %arg1 : i32, i32
  }
}

</mosaic_0001>

<llo_original>
// kernel: basic_block_bu_forward.3
$region0: #{basic_block_bu_forward.3}
  #allocation0 [shape = 'u32[]', space=smem, size = 0x4, offset = 0x4, fixed_abs, tag = 'smem constant byte address 0x4 - core index']
  #allocation1 [shape = 'u32[144,128]{1,0:T(1,128)}', space=vmem, size = 0x12000, scoped, tag = 'internal scratch']
  %s0 = inlined_call_operand.vmem [shape: f32[8,256], index: 0, kind: input, shape index: {}]
  %s1 = inlined_call_operand.vmem [shape: f32[8,1], index: 1, kind: input, shape index: {}]
  %s2 = inlined_call_operand.vmem [shape: f32[8,1], index: 2, kind: input, shape index: {}]
  %s3 = inlined_call_operand.vmem [shape: f32[8,1], index: 3, kind: input, shape index: {}]
  %s4 = inlined_call_operand.vmem [shape: f32[1,256], index: 4, kind: input, shape index: {}]
  %s5 = inlined_call_operand.vmem [shape: f32[1,256], index: 5, kind: input, shape index: {}]
  %s6 = inlined_call_operand.vmem [shape: f32[8,1], index: 6, kind: input, shape index: {}]
  %s7 = inlined_call_operand.vmem [shape: f32[8,256], index: 7, kind: input, shape index: {}]
  %s8 = inlined_call_operand.vmem [shape: f32[8,256], index: 8, kind: output, shape index: {0}]
  %s9 = inlined_call_operand.vmem [shape: f32[8,256], index: 9, kind: output, shape index: {1}]
  %10 = xla_tuple %s8, %s9
  %s11 = sld [smem:[#allocation0]]
  $region73: #{basic_block_bu_forward.3} parent=0
    _
  %s13 = ssub.s32 1, %s11
  %s14 = scalar_select 0, %s13, %s11
  loop: start=0, step=1, limit=4
  $region2: #{basic_block_bu_forward.3} parent=0 // loop_pre_header
    _
  $region3: #{basic_block_bu_forward.3} parent=0 // loop_header
    %s16 = sphi 0, %s20
    %p17 = scmp.ge.s32.totalorder %s16, 4
    %s23 = sphi 0, %s35
    %s24 = sphi 0, %s31
    %s25 = sphi 0, %s23
    %s26 = sphi 0, %s24
    %s27 = sphi 0, %s25
    %s28 = sphi 0, %s26
    %s40 = sphi 0, %s42
    %s43 = sphi 0, %s40
    %s44 = sphi 0, %s43
    %s60 = sphi 0, %s44
    %s66 = sphi 0, %s68
    %s69 = sphi 0, %s66
    %s70 = sphi 0, %s69
    %s86 = sphi 0, %s70
    %s92 = sphi 0, %s94
    %s95 = sphi 0, %s92
    %s96 = sphi 0, %s95
    %s112 = sphi 0, %s96
    %s118 = sphi 0, %s120
    %s121 = sphi 0, %s118
    %s122 = sphi 0, %s121
    %s138 = sphi 0, %s122
    %s144 = sphi 0, %s146
    %s147 = sphi 0, %s144
    %s148 = sphi 0, %s147
    %s164 = sphi 0, %s148
    %s170 = sphi 0, %s172
    %s173 = sphi 0, %s170
    %s174 = sphi 0, %s173
    %s190 = sphi 0, %s174
    %s196 = sphi 0, %s198
    %s199 = sphi 0, %s196
    %s200 = sphi 0, %s199
    %s216 = sphi 0, %s200
    %s224 = sphi 0, %s226
    %s227 = sphi 0, %s224
    %s228 = sphi 0, %s227
    %s244 = sphi 0, %s228
    %s252 = sphi 0, %s254
    %s255 = sphi 0, %s252
    %s256 = sphi 0, %s255
    %s272 = sphi 0, %s256
    %s280 = sphi 0, %s282
    %s283 = sphi 0, %s280
    %s284 = sphi 0, %s283
    %s300 = sphi 0, %s284
  $region4: #{basic_block_bu_forward.3} parent=0 // loop_header_branch
    %19 = sbr.rel (%p17) target = $region8
  $region5: #{basic_block_bu_forward.3} parent=0 // loop_body
    %s21 = ssub.s32 %s16, 1
    %s22 = ssub.s32 %s16, 2
    %s29 = sadd.s32 1, %s24
    %p30 = scmp.ge.s32.totalorder %s29, 2
    %s31 = scalar_select %p30, 0, %s29
    %s32 = sadd.s32 1, %s23
    %s33 = scalar_select %p30, %s32, %s23
    %p34 = scmp.ge.s32.totalorder %s33, 1
    %s35 = scalar_select %p34, 0, %s33
    %s36 = ssub.s32 %s23, %s35
    %s37 = ssub.s32 %s24, %s31
    %s38 = sor.u32 %s36, %s37
    %p39 = scmp.eq.s32.totalorder %s38, 0
    %s41 = sadd.s32 %s40, 1
    %s42 = scalar_select %p39, %s40, %s41
    %p45 = pneg %p39
    %p46 = scmp.eq.s32.totalorder %s16, 1
    %p47 = por %p45, %p46
    %p48 = scmp.ne.s32.totalorder %s40, %s43
    %p49 = scmp.eq.s32.totalorder %s16, 0
    %p50 = por %p48, %p49
    %p51 = scmp.ne.s32.totalorder %s40, %s43
    %p52 = scmp.eq.s32.totalorder %s21, 1
    %p53 = por %p51, %p52
    %p54 = scmp.ne.s32.totalorder %s43, %s44
    %p55 = scmp.eq.s32.totalorder %s21, 0
    %p56 = por %p54, %p55
    %p57 = scmp.ne.s32.totalorder %s43, %s44
    %p58 = scmp.eq.s32.totalorder %s22, 1
    %p59 = por %p57, %p58
    %p61 = scmp.ne.s32.totalorder %s44, %s60
    %p62 = scmp.eq.s32.totalorder %s22, 0
    %p63 = por %p61, %p62
    %s64 = ssub.s32 %s23, %s35
    %p65 = scmp.eq.s32.totalorder %s64, 0
    %s67 = sadd.s32 %s66, 1
    %s68 = scalar_select %p65, %s66, %s67
    %p71 = pneg %p65
    %p72 = scmp.eq.s32.totalorder %s16, 1
    %p73 = por %p71, %p72
    %p74 = scmp.ne.s32.totalorder %s66, %s69
    %p75 = scmp.eq.s32.totalorder %s16, 0
    %p76 = por %p74, %p75
    %p77 = scmp.ne.s32.totalorder %s66, %s69
    %p78 = scmp.eq.s32.totalorder %s21, 1
    %p79 = por %p77, %p78
    %p80 = scmp.ne.s32.totalorder %s69, %s70
    %p81 = scmp.eq.s32.totalorder %s21, 0
    %p82 = por %p80, %p81
    %p83 = scmp.ne.s32.totalorder %s69, %s70
    %p84 = scmp.eq.s32.totalorder %s22, 1
    %p85 = por %p83, %p84
    %p87 = scmp.ne.s32.totalorder %s70, %s86
    %p88 = scmp.eq.s32.totalorder %s22, 0
    %p89 = por %p87, %p88
    %s90 = ssub.s32 %s23, %s35
    %p91 = scmp.eq.s32.totalorder %s90, 0
    %s93 = sadd.s32 %s92, 1
    %s94 = scalar_select %p91, %s92, %s93
    %p97 = pneg %p91
    %p98 = scmp.eq.s32.totalorder %s16, 1
    %p99 = por %p97, %p98
    %p100 = scmp.ne.s32.totalorder %s92, %s95
    %p101 = scmp.eq.s32.totalorder %s16, 0
    %p102 = por %p100, %p101
    %p103 = scmp.ne.s32.totalorder %s92, %s95
    %p104 = scmp.eq.s32.totalorder %s21, 1
    %p105 = por %p103, %p104
    %p106 = scmp.ne.s32.totalorder %s95, %s96
    %p107 = scmp.eq.s32.totalorder %s21, 0
    %p108 = por %p106, %p107
    %p109 = scmp.ne.s32.totalorder %s95, %s96
    %p110 = scmp.eq.s32.totalorder %s22, 1
    %p111 = por %p109, %p110
    %p113 = scmp.ne.s32.totalorder %s96, %s112
    %p114 = scmp.eq.s32.totalorder %s22, 0
    %p115 = por %p113, %p114
    %s116 = ssub.s32 %s23, %s35
    %p117 = scmp.eq.s32.totalorder %s116, 0
    %s119 = sadd.s32 %s118, 1
    %s120 = scalar_select %p117, %s118, %s119
    %p123 = pneg %p117
    %p124 = scmp.eq.s32.totalorder %s16, 1
    %p125 = por %p123, %p124
    %p126 = scmp.ne.s32.totalorder %s118, %s121
    %p127 = scmp.eq.s32.totalorder %s16, 0
    %p128 = por %p126, %p127
    %p129 = scmp.ne.s32.totalorder %s118, %s121
    %p130 = scmp.eq.s32.totalorder %s21, 1
    %p131 = por %p129, %p130
    %p132 = scmp.ne.s32.totalorder %s121, %s122
    %p133 = scmp.eq.s32.totalorder %s21, 0
    %p134 = por %p132, %p133
    %p135 = scmp.ne.s32.totalorder %s121, %s122
    %p136 = scmp.eq.s32.totalorder %s22, 1
    %p137 = por %p135, %p136
    %p139 = scmp.ne.s32.totalorder %s122, %s138
    %p140 = scmp.eq.s32.totalorder %s22, 0
    %p141 = por %p139, %p140
    %s142 = ssub.s32 %s24, %s31
    %p143 = scmp.eq.s32.totalorder %s142, 0
    %s145 = sadd.s32 %s144, 1
    %s146 = scalar_select %p143, %s144, %s145
    %p149 = pneg %p143
    %p150 = scmp.eq.s32.totalorder %s16, 1
    %p151 = por %p149, %p150
    %p152 = scmp.ne.s32.totalorder %s144, %s147
    %p153 = scmp.eq.s32.totalorder %s16, 0
    %p154 = por %p152, %p153
    %p155 = scmp.ne.s32.totalorder %s144, %s147
    %p156 = scmp.eq.s32.totalorder %s21, 1
    %p157 = por %p155, %p156
    %p158 = scmp.ne.s32.totalorder %s147, %s148
    %p159 = scmp.eq.s32.totalorder %s21, 0
    %p160 = por %p158, %p159
    %p161 = scmp.ne.s32.totalorder %s147, %s148
    %p162 = scmp.eq.s32.totalorder %s22, 1
    %p163 = por %p161, %p162
    %p165 = scmp.ne.s32.totalorder %s148, %s164
    %p166 = scmp.eq.s32.totalorder %s22, 0
    %p167 = por %p165, %p166
    %s168 = ssub.s32 %s24, %s31
    %p169 = scmp.eq.s32.totalorder %s168, 0
    %s171 = sadd.s32 %s170, 1
    %s172 = scalar_select %p169, %s170, %s171
    %p175 = pneg %p169
    %p176 = scmp.eq.s32.totalorder %s16, 1
    %p177 = por %p175, %p176
    %p178 = scmp.ne.s32.totalorder %s170, %s173
    %p179 = scmp.eq.s32.totalorder %s16, 0
    %p180 = por %p178, %p179
    %p181 = scmp.ne.s32.totalorder %s170, %s173
    %p182 = scmp.eq.s32.totalorder %s21, 1
    %p183 = por %p181, %p182
    %p184 = scmp.ne.s32.totalorder %s173, %s174
    %p185 = scmp.eq.s32.totalorder %s21, 0
    %p186 = por %p184, %p185
    %p187 = scmp.ne.s32.totalorder %s173, %s174
    %p188 = scmp.eq.s32.totalorder %s22, 1
    %p189 = por %p187, %p188
    %p191 = scmp.ne.s32.totalorder %s174, %s190
    %p192 = scmp.eq.s32.totalorder %s22, 0
    %p193 = por %p191, %p192
    %s194 = ssub.s32 %s23, %s35
    %p195 = scmp.eq.s32.totalorder %s194, 0
    %s197 = sadd.s32 %s196, 1
    %s198 = scalar_select %p195, %s196, %s197
    %p201 = pneg %p195
    %p202 = scmp.eq.s32.totalorder %s16, 1
    %p203 = por %p201, %p202
    %p204 = scmp.ne.s32.totalorder %s196, %s199
    %p205 = scmp.eq.s32.totalorder %s16, 0
    %p206 = por %p204, %p205
    %p207 = scmp.ne.s32.totalorder %s196, %s199
    %p208 = scmp.eq.s32.totalorder %s21, 1
    %p209 = por %p207, %p208
    %p210 = scmp.ne.s32.totalorder %s199, %s200
    %p211 = scmp.eq.s32.totalorder %s21, 0
    %p212 = por %p210, %p211
    %p213 = scmp.ne.s32.totalorder %s199, %s200
    %p214 = scmp.eq.s32.totalorder %s22, 1
    %p215 = por %p213, %p214
    %p217 = scmp.ne.s32.totalorder %s200, %s216
    %p218 = scmp.eq.s32.totalorder %s22, 0
    %p219 = por %p217, %p218
    %s220 = ssub.s32 %s23, %s35
    %s221 = ssub.s32 %s24, %s31
    %s222 = sor.u32 %s220, %s221
    %p223 = scmp.eq.s32.totalorder %s222, 0
    %s225 = sadd.s32 %s224, 1
    %s226 = scalar_select %p223, %s224, %s225
    %p229 = pneg %p223
    %p230 = scmp.eq.s32.totalorder %s16, 1
    %p231 = por %p229, %p230
    %p232 = scmp.ne.s32.totalorder %s224, %s227
    %p233 = scmp.eq.s32.totalorder %s16, 0
    %p234 = por %p232, %p233
    %p235 = scmp.ne.s32.totalorder %s224, %s227
    %p236 = scmp.eq.s32.totalorder %s21, 1
    %p237 = por %p235, %p236
    %p238 = scmp.ne.s32.totalorder %s227, %s228
    %p239 = scmp.eq.s32.totalorder %s21, 0
    %p240 = por %p238, %p239
    %p241 = scmp.ne.s32.totalorder %s227, %s228
    %p242 = scmp.eq.s32.totalorder %s22, 1
    %p243 = por %p241, %p242
    %p245 = scmp.ne.s32.totalorder %s228, %s244
    %p246 = scmp.eq.s32.totalorder %s22, 0
    %p247 = por %p245, %p246
    %s248 = ssub.s32 %s23, %s35
    %s249 = ssub.s32 %s24, %s31
    %s250 = sor.u32 %s248, %s249
    %p251 = scmp.eq.s32.totalorder %s250, 0
    %s253 = sadd.s32 %s252, 1
    %s254 = scalar_select %p251, %s252, %s253
    %p257 = pneg %p251
    %p258 = scmp.eq.s32.totalorder %s16, 1
    %p259 = por %p257, %p258
    %p260 = scmp.ne.s32.totalorder %s252, %s255
    %p261 = scmp.eq.s32.totalorder %s16, 0
    %p262 = por %p260, %p261
    %p263 = scmp.ne.s32.totalorder %s252, %s255
    %p264 = scmp.eq.s32.totalorder %s21, 1
    %p265 = por %p263, %p264
    %p266 = scmp.ne.s32.totalorder %s255, %s256
    %p267 = scmp.eq.s32.totalorder %s21, 0
    %p268 = por %p266, %p267
    %p269 = scmp.ne.s32.totalorder %s255, %s256
    %p270 = scmp.eq.s32.totalorder %s22, 1
    %p271 = por %p269, %p270
    %p273 = scmp.ne.s32.totalorder %s256, %s272
    %p274 = scmp.eq.s32.totalorder %s22, 0
    %p275 = por %p273, %p274
    %s276 = ssub.s32 %s23, %s35
    %s277 = ssub.s32 %s24, %s31
    %s278 = sor.u32 %s276, %s277
    %p279 = scmp.eq.s32.totalorder %s278, 0
    %s281 = sadd.s32 %s280, 1
    %s282 = scalar_select %p279, %s280, %s281
    %p285 = pneg %p279
    %p286 = scmp.eq.s32.totalorder %s16, 1
    %p287 = por %p285, %p286
    %p288 = scmp.ne.s32.totalorder %s280, %s283
    %p289 = scmp.eq.s32.totalorder %s16, 0
    %p290 = por %p288, %p289
    %p291 = scmp.ne.s32.totalorder %s280, %s283
    %p292 = scmp.eq.s32.totalorder %s21, 1
    %p293 = por %p291, %p292
    %p294 = scmp.ne.s32.totalorder %s283, %s284
    %p295 = scmp.eq.s32.totalorder %s21, 0
    %p296 = por %p294, %p295
    %p297 = scmp.ne.s32.totalorder %s283, %s284
    %p298 = scmp.eq.s32.totalorder %s22, 1
    %p299 = por %p297, %p298
    %p301 = scmp.ne.s32.totalorder %s284, %s300
    %p302 = scmp.eq.s32.totalorder %s22, 0
    %p303 = por %p301, %p302
    %p304 = scmp.le.s32.totalorder 1, %s16
    %p305 = scmp.lt.s32.totalorder %s16, 3
    %p306 = pnand %p304, %p305
    %p307 = pneg %p306
    // Predicated region
    $region9: #{basic_block_bu_forward.3} parent=5 // pred_check
      _
    $region10: #{basic_block_bu_forward.3} parent=5 // pred_check_branch
      %309 = sbr.rel (%p306) target = $region12
    $region11: #{basic_block_bu_forward.3} parent=5 // pred_region
      %s310 = ssub.s32 %s16, 1
      // Predicated region
      $region13: #{basic_block_bu_forward.3} parent=11 // pred_check
        %p311 = pneg %p82
      $region14: #{basic_block_bu_forward.3} parent=11 // pred_check_branch
        %313 = sbr.rel (%p311) target = $region16
      $region15: #{basic_block_bu_forward.3} parent=11 // pred_region
        %p314 = scmp.lt.s32.totalorder %s25, 0
        %s315 = scalar_select %p314, %s25, 0
        %s316 = smul.addr %s315, 8
        %s317 = scalar_lea.vmem %s1, %s316
      $region16: #{basic_block_bu_forward.3} parent=11 // pred_fallthru
        _
      // Predicated region
      $region17: #{basic_block_bu_forward.3} parent=11 // pred_check
        %p318 = pneg %p108
      $region18: #{basic_block_bu_forward.3} parent=11 // pred_check_branch
        %320 = sbr.rel (%p318) target = $region20
      $region19: #{basic_block_bu_forward.3} parent=11 // pred_region
        %p321 = scmp.lt.s32.totalorder %s25, 0
        %s322 = scalar_select %p321, %s25, 0
        %s323 = smul.addr %s322, 8
        %s324 = scalar_lea.vmem %s2, %s323
      $region20: #{basic_block_bu_forward.3} parent=11 // pred_fallthru
        _
      // Predicated region
      $region21: #{basic_block_bu_forward.3} parent=11 // pred_check
        %p325 = pneg %p134
      $region22: #{basic_block_bu_forward.3} parent=11 // pred_check_branch
        %327 = sbr.rel (%p325) target = $region24
      $region23: #{basic_block_bu_forward.3} parent=11 // pred_region
        %p328 = scmp.lt.s32.totalorder %s25, 0
        %s329 = scalar_select %p328, %s25, 0
        %s330 = smul.addr %s329, 8
        %s331 = scalar_lea.vmem %s3, %s330
      $region24: #{basic_block_bu_forward.3} parent=11 // pred_fallthru
        _
      // Predicated region
      $region25: #{basic_block_bu_forward.3} parent=11 // pred_check
        %p332 = pneg %p212
      $region26: #{basic_block_bu_forward.3} parent=11 // pred_check_branch
        %334 = sbr.rel (%p332) target = $region28
      $region27: #{basic_block_bu_forward.3} parent=11 // pred_region
        %p335 = scmp.lt.s32.totalorder %s25, 0
        %s336 = scalar_select %p335, %s25, 0
        %s337 = smul.addr %s336, 8
        %s338 = scalar_lea.vmem %s6, %s337
      $region28: #{basic_block_bu_forward.3} parent=11 // pred_fallthru
        _
    $region12: #{basic_block_bu_forward.3} parent=5 // pred_fallthru
      _
    %p339 = scmp.lt.s32.totalorder %s16, 2
    // Predicated region
    $region29: #{basic_block_bu_forward.3} parent=5 // pred_check
      %p340 = pneg %p339
    $region30: #{basic_block_bu_forward.3} parent=5 // pred_check_branch
      %342 = sbr.rel (%p340) target = $region32
    $region31: #{basic_block_bu_forward.3} parent=5 // pred_region
      // Predicated region
      $region33: #{basic_block_bu_forward.3} parent=31 // pred_check
        %p343 = pneg %p50
      $region34: #{basic_block_bu_forward.3} parent=31 // pred_check_branch
        %345 = sbr.rel (%p343) target = $region36
      $region35: #{basic_block_bu_forward.3} parent=31 // pred_region
        %p346 = scmp.lt.s32.totalorder %s23, 0
        %s347 = scalar_select %p346, %s23, 0
        %p348 = scmp.lt.s32.totalorder %s24, 1
        %s349 = scalar_select %p348, %s24, 1
        %s350 = smul.addr %s347, 2
        %s351 = sadd.s32 %s349, %s350
        %s352 = smul.addr %s351, 8
        %s353 = scalar_lea.vmem %s0, %s352
      $region36: #{basic_block_bu_forward.3} parent=31 // pred_fallthru
        _
      // Predicated region
      $region37: #{basic_block_bu_forward.3} parent=31 // pred_check
        %p354 = pneg %p154
      $region38: #{basic_block_bu_forward.3} parent=31 // pred_check_branch
        %356 = sbr.rel (%p354) target = $region40
      $region39: #{basic_block_bu_forward.3} parent=31 // pred_region
        %p357 = scmp.lt.s32.totalorder %s24, 1
        %s358 = scalar_select %p357, %s24, 1
        %s359 = scalar_lea.vmem %s4, %s358
      $region40: #{basic_block_bu_forward.3} parent=31 // pred_fallthru
        _
      // Predicated region
      $region41: #{basic_block_bu_forward.3} parent=31 // pred_check
        %p360 = pneg %p180
      $region42: #{basic_block_bu_forward.3} parent=31 // pred_check_branch
        %362 = sbr.rel (%p360) target = $region44
      $region43: #{basic_block_bu_forward.3} parent=31 // pred_region
        %p363 = scmp.lt.s32.totalorder %s24, 1
        %s364 = scalar_select %p363, %s24, 1
        %s365 = scalar_lea.vmem %s5, %s364
      $region44: #{basic_block_bu_forward.3} parent=31 // pred_fallthru
        _
      // Predicated region
      $region45: #{basic_block_bu_forward.3} parent=31 // pred_check
        %p366 = pneg %p234
      $region46: #{basic_block_bu_forward.3} parent=31 // pred_check_branch
        %368 = sbr.rel (%p366) target = $region48
      $region47: #{basic_block_bu_forward.3} parent=31 // pred_region
        %p369 = scmp.lt.s32.totalorder %s23, 0
        %s370 = scalar_select %p369, %s23, 0
        %p371 = scmp.lt.s32.totalorder %s24, 1
        %s372 = scalar_select %p371, %s24, 1
        %s373 = smul.addr %s370, 2
        %s374 = sadd.s32 %s372, %s373
        %s375 = smul.addr %s374, 8
        %s376 = scalar_lea.vmem %s7, %s375
      $region48: #{basic_block_bu_forward.3} parent=31 // pred_fallthru
        _
    $region32: #{basic_block_bu_forward.3} parent=5 // pred_fallthru
      _
    %p377 = scmp.le.s32.totalorder 1, %s16
    %p378 = scmp.lt.s32.totalorder %s16, 3
    %p379 = pnand %p377, %p378
    %p380 = pneg %p379
    // Predicated region
    $region49: #{basic_block_bu_forward.3} parent=5 // pred_check
      _
    $region50: #{basic_block_bu_forward.3} parent=5 // pred_check_branch
      %382 = sbr.rel (%p379) target = $region52
    $region51: #{basic_block_bu_forward.3} parent=5 // pred_region
      %s383 = ssub.s32 %s16, 1
      %p384 = scmp.lt.s32.totalorder %s25, 0
      %s385 = scalar_select %p384, %s25, 0
      %p386 = scmp.lt.s32.totalorder %s26, 1
      %s387 = scalar_select %p386, %s26, 1
      %s388 = smul.addr %s385, 2
      %s389 = sadd.s32 %s387, %s388
      %s390 = smul.addr %s389, 8
      %s391 = scalar_lea.vmem %s0, %s390
      %p392 = pneg %p56
      %p393 = pneg %p53
      %p394 = scmp.lt.s32.totalorder %s25, 0
      %s395 = scalar_select %p394, %s25, 0
      %s396 = smul.addr %s395, 8
      %s397 = scalar_lea.vmem %s1, %s396
      %p398 = pneg %p82
      %p399 = pneg %p79
      %p400 = scmp.lt.s32.totalorder %s25, 0
      %s401 = scalar_select %p400, %s25, 0
      %s402 = smul.addr %s401, 8
      %s403 = scalar_lea.vmem %s2, %s402
      %p404 = pneg %p108
      %p405 = pneg %p105
      %p406 = scmp.lt.s32.totalorder %s25, 0
      %s407 = scalar_select %p406, %s25, 0
      %s408 = smul.addr %s407, 8
      %s409 = scalar_lea.vmem %s3, %s408
      %p410 = pneg %p134
      %p411 = pneg %p131
      %p412 = scmp.lt.s32.totalorder %s26, 1
      %s413 = scalar_select %p412, %s26, 1
      %s414 = scalar_lea.vmem %s4, %s413
      %p415 = pneg %p160
      %p416 = pneg %p157
      %p417 = scmp.lt.s32.totalorder %s26, 1
      %s418 = scalar_select %p417, %s26, 1
      %s419 = scalar_lea.vmem %s5, %s418
      %p420 = pneg %p186
      %p421 = pneg %p183
      %p422 = scmp.lt.s32.totalorder %s25, 0
      %s423 = scalar_select %p422, %s25, 0
      %s424 = smul.addr %s423, 8
      %s425 = scalar_lea.vmem %s6, %s424
      %p426 = pneg %p212
      %p427 = pneg %p209
      %p428 = scmp.lt.s32.totalorder %s25, 0
      %s429 = scalar_select %p428, %s25, 0
      %p430 = scmp.lt.s32.totalorder %s26, 1
      %s431 = scalar_select %p430, %s26, 1
      %s432 = smul.addr %s429, 2
      %s433 = sadd.s32 %s431, %s432
      %s434 = smul.addr %s433, 8
      %s435 = scalar_lea.vmem %s7, %s434
      %p436 = pneg %p240
      %p437 = pneg %p237
      %p438 = pneg %p268
      %p439 = pneg %p265
      %p440 = scmp.lt.s32.totalorder %s25, 0
      %s441 = scalar_select %p440, %s25, 0
      %p442 = scmp.lt.s32.totalorder %s26, 1
      %s443 = scalar_select %p442, %s26, 1
      %s444 = smul.addr %s441, 2
      %s445 = sadd.s32 %s443, %s444
      %s446 = smul.addr %s445, 8
      %s447 = scalar_lea.vmem %s8, %s446
      %p448 = pneg %p296
      %p449 = pneg %p293
      %p450 = scmp.lt.s32.totalorder %s25, 0
      %s451 = scalar_select %p450, %s25, 0
      %p452 = scmp.lt.s32.totalorder %s26, 1
      %s453 = scalar_select %p452, %s26, 1
      %s454 = smul.addr %s451, 2
      %s455 = sadd.s32 %s453, %s454
      %s456 = smul.addr %s455, 8
      %s457 = scalar_lea.vmem %s9, %s456
      %p458 = scmp.lt.s32.totalorder %s25, 0
      %s459 = scalar_select %p458, %s25, 0
      %p460 = scmp.lt.s32.totalorder %s26, 1
      %s461 = scalar_select %p460, %s26, 1
      %s462 = smul.addr %s459, 2
      %s463 = sadd.s32 %s461, %s462
      %s464 = smul.addr %s463, 8
      %s465 = scalar_lea.vmem %s0, %s464
      %p466 = scmp.lt.s32.totalorder %s25, 0
      %s467 = scalar_select %p466, %s25, 0
      %s468 = smul.addr %s467, 8
      %s469 = scalar_lea.vmem %s1, %s468
      %p470 = scmp.lt.s32.totalorder %s25, 0
      %s471 = scalar_select %p470, %s25, 0
      %s472 = smul.addr %s471, 8
      %s473 = scalar_lea.vmem %s2, %s472
      %p474 = scmp.lt.s32.totalorder %s25, 0
      %s475 = scalar_select %p474, %s25, 0
      %s476 = smul.addr %s475, 8
      %s477 = scalar_lea.vmem %s3, %s476
      %p478 = scmp.lt.s32.totalorder %s26, 1
      %s479 = scalar_select %p478, %s26, 1
      %s480 = scalar_lea.vmem %s4, %s479
      %p481 = scmp.lt.s32.totalorder %s26, 1
      %s482 = scalar_select %p481, %s26, 1
      %s483 = scalar_lea.vmem %s5, %s482
      %p484 = scmp.lt.s32.totalorder %s25, 0
      %s485 = scalar_select %p484, %s25, 0
      %s486 = smul.addr %s485, 8
      %s487 = scalar_lea.vmem %s6, %s486
      %p488 = scmp.lt.s32.totalorder %s25, 0
      %s489 = scalar_select %p488, %s25, 0
      %p490 = scmp.lt.s32.totalorder %s26, 1
      %s491 = scalar_select %p490, %s26, 1
      %s492 = smul.addr %s489, 2
      %s493 = sadd.s32 %s491, %s492
      %s494 = smul.addr %s493, 8
      %s495 = scalar_lea.vmem %s7, %s494
      %p496 = scmp.lt.s32.totalorder %s25, 0
      %s497 = scalar_select %p496, %s25, 0
      %p498 = scmp.lt.s32.totalorder %s26, 1
      %s499 = scalar_select %p498, %s26, 1
      %s500 = smul.addr %s497, 2
      %s501 = sadd.s32 %s499, %s500
      %s502 = smul.addr %s501, 8
      %s503 = scalar_lea.vmem %s8, %s502
      %p504 = scmp.lt.s32.totalorder %s25, 0
      %s505 = scalar_select %p504, %s25, 0
      %p506 = scmp.lt.s32.totalorder %s26, 1
      %s507 = scalar_select %p506, %s26, 1
      %s508 = smul.addr %s505, 2
      %s509 = sadd.s32 %s507, %s508
      %s510 = smul.addr %s509, 8
      %s511 = scalar_lea.vmem %s9, %s510
      %v512 = vld [vmem:[%s465] sm:$0xff]
      %v513 = vld [vmem:[%s469] sm:$0xff]
      %515 = vset.pattern.permute.xlu0 0
      %516 = vperm.xlu0 %515, %v513
      %v517 = vpop.permute.xlu0 %516
      %v519 = vmul.f32 %v512, %v517
      %v520 = vld [vmem:[%s473] sm:$0xff]
      %522 = vset.pattern.permute.xlu0 0
      %523 = vperm.xlu0 %522, %v520
      %v524 = vpop.permute.xlu0 %523
      %v526 = vadd.f32 %v519, %v524
      %v527 = vmax.f32 %v526, 0.0
      %v528 = vld [vmem:[%s477] sm:$0xff]
      %v529 = vld [vmem:[%s480] sm:$0x1]
      %531 = vset.pattern.permute.xlu0 0
      %532 = vperm.xlu0 %531, %v528
      %v533 = vpop.permute.xlu0 %532
      %v536 = vlaneseq
      %v537 = vshrl.u32 %v536, 7
      %v538 = vsub.s32 0, %v537
      %v539 = vrot.slane %v529, %v538
      %v541 = vmul.f32 %v533, %v539
      %v542 = vld [vmem:[%s483] sm:$0x1]
      %v544 = vlaneseq
      %v545 = vshrl.u32 %v544, 7
      %v546 = vsub.s32 0, %v545
      %v547 = vrot.slane %v542, %v546
      %v549 = vadd.f32 %v541, %v547
      %v550 = vsub.f32 1.0, %v549
      %v551 = vmul.f32 %v527, %v550
      %v552 = vld [vmem:[%s487] sm:$0xff]
      %554 = vset.pattern.permute.xlu0 0
      %555 = vperm.xlu0 %554, %v552
      %v556 = vpop.permute.xlu0 %555
      %v558 = vmul.f32 %v551, %v556
      %559 = vst [vmem:[%s503] sm:$0xff] %v558
      %v560 = vld [vmem:[%s495] sm:$0xff]
      %v561 = vadd.f32 %v558, %v560
      %v562 = vmax.f32 %v561, 0.0
      %563 = vst [vmem:[%s511] sm:$0xff] %v562
      %p564 = scmp.lt.s32.totalorder %s25, 0
      %s565 = scalar_select %p564, %s25, 0
      %p566 = scmp.lt.s32.totalorder %s26, 1
      %s567 = scalar_select %p566, %s26, 1
      %s568 = smul.addr %s565, 2
      %s569 = sadd.s32 %s567, %s568
      %s570 = smul.addr %s569, 8
      %s571 = scalar_lea.vmem %s8, %s570
      %p572 = scmp.lt.s32.totalorder %s25, 0
      %s573 = scalar_select %p572, %s25, 0
      %p574 = scmp.lt.s32.totalorder %s26, 1
      %s575 = scalar_select %p574, %s26, 1
      %s576 = smul.addr %s573, 2
      %s577 = sadd.s32 %s575, %s576
      %s578 = smul.addr %s577, 8
      %s579 = scalar_lea.vmem %s9, %s578
      // Predicated region
      $region53: #{basic_block_bu_forward.3} parent=51 // pred_check
        %p580 = pneg %p265
      $region54: #{basic_block_bu_forward.3} parent=51 // pred_check_branch
        %582 = sbr.rel (%p580) target = $region56
      $region55: #{basic_block_bu_forward.3} parent=51 // pred_region
        _
      $region56: #{basic_block_bu_forward.3} parent=51 // pred_fallthru
        _
      // Predicated region
      $region57: #{basic_block_bu_forward.3} parent=51 // pred_check
        %p583 = pneg %p293
      $region58: #{basic_block_bu_forward.3} parent=51 // pred_check_branch
        %585 = sbr.rel (%p583) target = $region60
      $region59: #{basic_block_bu_forward.3} parent=51 // pred_region
        _
      $region60: #{basic_block_bu_forward.3} parent=51 // pred_fallthru
        _
    $region52: #{basic_block_bu_forward.3} parent=5 // pred_fallthru
      _
    %p586 = scmp.le.s32.totalorder 2, %s16
    // Predicated region
    $region61: #{basic_block_bu_forward.3} parent=5 // pred_check
      %p587 = pneg %p586
    $region62: #{basic_block_bu_forward.3} parent=5 // pred_check_branch
      %589 = sbr.rel (%p587) target = $region64
    $region63: #{basic_block_bu_forward.3} parent=5 // pred_region
      %s590 = ssub.s32 %s16, 2
      // Predicated region
      $region65: #{basic_block_bu_forward.3} parent=63 // pred_check
        %p591 = pneg %p271
      $region66: #{basic_block_bu_forward.3} parent=63 // pred_check_branch
        %593 = sbr.rel (%p591) target = $region68
      $region67: #{basic_block_bu_forward.3} parent=63 // pred_region
        %p594 = scmp.lt.s32.totalorder %s27, 0
        %s595 = scalar_select %p594, %s27, 0
        %p596 = scmp.lt.s32.totalorder %s28, 1
        %s597 = scalar_select %p596, %s28, 1
        %s598 = smul.addr %s595, 2
        %s599 = sadd.s32 %s597, %s598
        %s600 = smul.addr %s599, 8
        %s601 = scalar_lea.vmem %s8, %s600
      $region68: #{basic_block_bu_forward.3} parent=63 // pred_fallthru
        _
      // Predicated region
      $region69: #{basic_block_bu_forward.3} parent=63 // pred_check
        %p602 = pneg %p299
      $region70: #{basic_block_bu_forward.3} parent=63 // pred_check_branch
        %604 = sbr.rel (%p602) target = $region72
      $region71: #{basic_block_bu_forward.3} parent=63 // pred_region
        %p605 = scmp.lt.s32.totalorder %s27, 0
        %s606 = scalar_select %p605, %s27, 0
        %p607 = scmp.lt.s32.totalorder %s28, 1
        %s608 = scalar_select %p607, %s28, 1
        %s609 = smul.addr %s606, 2
        %s610 = sadd.s32 %s608, %s609
        %s611 = smul.addr %s610, 8
        %s612 = scalar_lea.vmem %s9, %s611
      $region72: #{basic_block_bu_forward.3} parent=63 // pred_fallthru
        _
    $region64: #{basic_block_bu_forward.3} parent=5 // pred_fallthru
      _
  $region6: #{basic_block_bu_forward.3} parent=0 // loop_footer
    %s20 = sadd.s32 1, %s16
  $region7: #{basic_block_bu_forward.3} parent=0 // loop_footer_branch
    %15 = sbr.rel target = $region3
  $region8: #{basic_block_bu_forward.3} parent=0 // loop_exit
    _

// kernel: basic_block_bu_forward.2
$region0: #{basic_block_bu_forward.2}
  #allocation0 [shape = 'u32[]', space=smem, size = 0x4, offset = 0x4, fixed_abs, tag = 'smem constant byte address 0x4 - core index']
  #allocation1 [shape = 'u32[144,128]{1,0:T(1,128)}', space=vmem, size = 0x12000, scoped, tag = 'internal scratch']
  %s0 = inlined_call_operand.vmem [shape: f32[8,256], index: 0, kind: input, shape index: {}]
  %s1 = inlined_call_operand.vmem [shape: f32[8,1], index: 1, kind: input, shape index: {}]
  %s2 = inlined_call_operand.vmem [shape: f32[8,1], index: 2, kind: input, shape index: {}]
  %s3 = inlined_call_operand.vmem [shape: f32[8,1], index: 3, kind: input, shape index: {}]
  %s4 = inlined_call_operand.vmem [shape: f32[1,256], index: 4, kind: input, shape index: {}]
  %s5 = inlined_call_operand.vmem [shape: f32[1,256], index: 5, kind: input, shape index: {}]
  %s6 = inlined_call_operand.vmem [shape: f32[8,1], index: 6, kind: input, shape index: {}]
  %s7 = inlined_call_operand.vmem [shape: f32[8,256], index: 7, kind: output, shape index: {}]
  %s8 = sld [smem:[#allocation0]]
  $region61: #{basic_block_bu_forward.2} parent=0
    _
  %s10 = ssub.s32 1, %s8
  %s11 = scalar_select 0, %s10, %s8
  loop: start=0, step=1, limit=4
  $region2: #{basic_block_bu_forward.2} parent=0 // loop_pre_header
    _
  $region3: #{basic_block_bu_forward.2} parent=0 // loop_header
    %s13 = sphi 0, %s17
    %p14 = scmp.ge.s32.totalorder %s13, 4
    %s20 = sphi 0, %s32
    %s21 = sphi 0, %s28
    %s22 = sphi 0, %s20
    %s23 = sphi 0, %s21
    %s24 = sphi 0, %s22
    %s25 = sphi 0, %s23
    %s37 = sphi 0, %s39
    %s40 = sphi 0, %s37
    %s41 = sphi 0, %s40
    %s57 = sphi 0, %s41
    %s63 = sphi 0, %s65
    %s66 = sphi 0, %s63
    %s67 = sphi 0, %s66
    %s83 = sphi 0, %s67
    %s89 = sphi 0, %s91
    %s92 = sphi 0, %s89
    %s93 = sphi 0, %s92
    %s109 = sphi 0, %s93
    %s115 = sphi 0, %s117
    %s118 = sphi 0, %s115
    %s119 = sphi 0, %s118
    %s135 = sphi 0, %s119
    %s141 = sphi 0, %s143
    %s144 = sphi 0, %s141
    %s145 = sphi 0, %s144
    %s161 = sphi 0, %s145
    %s167 = sphi 0, %s169
    %s170 = sphi 0, %s167
    %s171 = sphi 0, %s170
    %s187 = sphi 0, %s171
    %s193 = sphi 0, %s195
    %s196 = sphi 0, %s193
    %s197 = sphi 0, %s196
    %s213 = sphi 0, %s197
    %s221 = sphi 0, %s223
    %s224 = sphi 0, %s221
    %s225 = sphi 0, %s224
    %s241 = sphi 0, %s225
  $region4: #{basic_block_bu_forward.2} parent=0 // loop_header_branch
    %16 = sbr.rel (%p14) target = $region8
  $region5: #{basic_block_bu_forward.2} parent=0 // loop_body
    %s18 = ssub.s32 %s13, 1
    %s19 = ssub.s32 %s13, 2
    %s26 = sadd.s32 1, %s21
    %p27 = scmp.ge.s32.totalorder %s26, 2
    %s28 = scalar_select %p27, 0, %s26
    %s29 = sadd.s32 1, %s20
    %s30 = scalar_select %p27, %s29, %s20
    %p31 = scmp.ge.s32.totalorder %s30, 1
    %s32 = scalar_select %p31, 0, %s30
    %s33 = ssub.s32 %s20, %s32
    %s34 = ssub.s32 %s21, %s28
    %s35 = sor.u32 %s33, %s34
    %p36 = scmp.eq.s32.totalorder %s35, 0
    %s38 = sadd.s32 %s37, 1
    %s39 = scalar_select %p36, %s37, %s38
    %p42 = pneg %p36
    %p43 = scmp.eq.s32.totalorder %s13, 1
    %p44 = por %p42, %p43
    %p45 = scmp.ne.s32.totalorder %s37, %s40
    %p46 = scmp.eq.s32.totalorder %s13, 0
    %p47 = por %p45, %p46
    %p48 = scmp.ne.s32.totalorder %s37, %s40
    %p49 = scmp.eq.s32.totalorder %s18, 1
    %p50 = por %p48, %p49
    %p51 = scmp.ne.s32.totalorder %s40, %s41
    %p52 = scmp.eq.s32.totalorder %s18, 0
    %p53 = por %p51, %p52
    %p54 = scmp.ne.s32.totalorder %s40, %s41
    %p55 = scmp.eq.s32.totalorder %s19, 1
    %p56 = por %p54, %p55
    %p58 = scmp.ne.s32.totalorder %s41, %s57
    %p59 = scmp.eq.s32.totalorder %s19, 0
    %p60 = por %p58, %p59
    %s61 = ssub.s32 %s20, %s32
    %p62 = scmp.eq.s32.totalorder %s61, 0
    %s64 = sadd.s32 %s63, 1
    %s65 = scalar_select %p62, %s63, %s64
    %p68 = pneg %p62
    %p69 = scmp.eq.s32.totalorder %s13, 1
    %p70 = por %p68, %p69
    %p71 = scmp.ne.s32.totalorder %s63, %s66
    %p72 = scmp.eq.s32.totalorder %s13, 0
    %p73 = por %p71, %p72
    %p74 = scmp.ne.s32.totalorder %s63, %s66
    %p75 = scmp.eq.s32.totalorder %s18, 1
    %p76 = por %p74, %p75
    %p77 = scmp.ne.s32.totalorder %s66, %s67
    %p78 = scmp.eq.s32.totalorder %s18, 0
    %p79 = por %p77, %p78
    %p80 = scmp.ne.s32.totalorder %s66, %s67
    %p81 = scmp.eq.s32.totalorder %s19, 1
    %p82 = por %p80, %p81
    %p84 = scmp.ne.s32.totalorder %s67, %s83
    %p85 = scmp.eq.s32.totalorder %s19, 0
    %p86 = por %p84, %p85
    %s87 = ssub.s32 %s20, %s32
    %p88 = scmp.eq.s32.totalorder %s87, 0
    %s90 = sadd.s32 %s89, 1
    %s91 = scalar_select %p88, %s89, %s90
    %p94 = pneg %p88
    %p95 = scmp.eq.s32.totalorder %s13, 1
    %p96 = por %p94, %p95
    %p97 = scmp.ne.s32.totalorder %s89, %s92
    %p98 = scmp.eq.s32.totalorder %s13, 0
    %p99 = por %p97, %p98
    %p100 = scmp.ne.s32.totalorder %s89, %s92
    %p101 = scmp.eq.s32.totalorder %s18, 1
    %p102 = por %p100, %p101
    %p103 = scmp.ne.s32.totalorder %s92, %s93
    %p104 = scmp.eq.s32.totalorder %s18, 0
    %p105 = por %p103, %p104
    %p106 = scmp.ne.s32.totalorder %s92, %s93
    %p107 = scmp.eq.s32.totalorder %s19, 1
    %p108 = por %p106, %p107
    %p110 = scmp.ne.s32.totalorder %s93, %s109
    %p111 = scmp.eq.s32.totalorder %s19, 0
    %p112 = por %p110, %p111
    %s113 = ssub.s32 %s20, %s32
    %p114 = scmp.eq.s32.totalorder %s113, 0
    %s116 = sadd.s32 %s115, 1
    %s117 = scalar_select %p114, %s115, %s116
    %p120 = pneg %p114
    %p121 = scmp.eq.s32.totalorder %s13, 1
    %p122 = por %p120, %p121
    %p123 = scmp.ne.s32.totalorder %s115, %s118
    %p124 = scmp.eq.s32.totalorder %s13, 0
    %p125 = por %p123, %p124
    %p126 = scmp.ne.s32.totalorder %s115, %s118
    %p127 = scmp.eq.s32.totalorder %s18, 1
    %p128 = por %p126, %p127
    %p129 = scmp.ne.s32.totalorder %s118, %s119
    %p130 = scmp.eq.s32.totalorder %s18, 0
    %p131 = por %p129, %p130
    %p132 = scmp.ne.s32.totalorder %s118, %s119
    %p133 = scmp.eq.s32.totalorder %s19, 1
    %p134 = por %p132, %p133
    %p136 = scmp.ne.s32.totalorder %s119, %s135
    %p137 = scmp.eq.s32.totalorder %s19, 0
    %p138 = por %p136, %p137
    %s139 = ssub.s32 %s21, %s28
    %p140 = scmp.eq.s32.totalorder %s139, 0
    %s142 = sadd.s32 %s141, 1
    %s143 = scalar_select %p140, %s141, %s142
    %p146 = pneg %p140
    %p147 = scmp.eq.s32.totalorder %s13, 1
    %p148 = por %p146, %p147
    %p149 = scmp.ne.s32.totalorder %s141, %s144
    %p150 = scmp.eq.s32.totalorder %s13, 0
    %p151 = por %p149, %p150
    %p152 = scmp.ne.s32.totalorder %s141, %s144
    %p153 = scmp.eq.s32.totalorder %s18, 1
    %p154 = por %p152, %p153
    %p155 = scmp.ne.s32.totalorder %s144, %s145
    %p156 = scmp.eq.s32.totalorder %s18, 0
    %p157 = por %p155, %p156
    %p158 = scmp.ne.s32.totalorder %s144, %s145
    %p159 = scmp.eq.s32.totalorder %s19, 1
    %p160 = por %p158, %p159
    %p162 = scmp.ne.s32.totalorder %s145, %s161
    %p163 = scmp.eq.s32.totalorder %s19, 0
    %p164 = por %p162, %p163
    %s165 = ssub.s32 %s21, %s28
    %p166 = scmp.eq.s32.totalorder %s165, 0
    %s168 = sadd.s32 %s167, 1
    %s169 = scalar_select %p166, %s167, %s168
    %p172 = pneg %p166
    %p173 = scmp.eq.s32.totalorder %s13, 1
    %p174 = por %p172, %p173
    %p175 = scmp.ne.s32.totalorder %s167, %s170
    %p176 = scmp.eq.s32.totalorder %s13, 0
    %p177 = por %p175, %p176
    %p178 = scmp.ne.s32.totalorder %s167, %s170
    %p179 = scmp.eq.s32.totalorder %s18, 1
    %p180 = por %p178, %p179
    %p181 = scmp.ne.s32.totalorder %s170, %s171
    %p182 = scmp.eq.s32.totalorder %s18, 0
    %p183 = por %p181, %p182
    %p184 = scmp.ne.s32.totalorder %s170, %s171
    %p185 = scmp.eq.s32.totalorder %s19, 1
    %p186 = por %p184, %p185
    %p188 = scmp.ne.s32.totalorder %s171, %s187
    %p189 = scmp.eq.s32.totalorder %s19, 0
    %p190 = por %p188, %p189
    %s191 = ssub.s32 %s20, %s32
    %p192 = scmp.eq.s32.totalorder %s191, 0
    %s194 = sadd.s32 %s193, 1
    %s195 = scalar_select %p192, %s193, %s194
    %p198 = pneg %p192
    %p199 = scmp.eq.s32.totalorder %s13, 1
    %p200 = por %p198, %p199
    %p201 = scmp.ne.s32.totalorder %s193, %s196
    %p202 = scmp.eq.s32.totalorder %s13, 0
    %p203 = por %p201, %p202
    %p204 = scmp.ne.s32.totalorder %s193, %s196
    %p205 = scmp.eq.s32.totalorder %s18, 1
    %p206 = por %p204, %p205
    %p207 = scmp.ne.s32.totalorder %s196, %s197
    %p208 = scmp.eq.s32.totalorder %s18, 0
    %p209 = por %p207, %p208
    %p210 = scmp.ne.s32.totalorder %s196, %s197
    %p211 = scmp.eq.s32.totalorder %s19, 1
    %p212 = por %p210, %p211
    %p214 = scmp.ne.s32.totalorder %s197, %s213
    %p215 = scmp.eq.s32.totalorder %s19, 0
    %p216 = por %p214, %p215
    %s217 = ssub.s32 %s20, %s32
    %s218 = ssub.s32 %s21, %s28
    %s219 = sor.u32 %s217, %s218
    %p220 = scmp.eq.s32.totalorder %s219, 0
    %s222 = sadd.s32 %s221, 1
    %s223 = scalar_select %p220, %s221, %s222
    %p226 = pneg %p220
    %p227 = scmp.eq.s32.totalorder %s13, 1
    %p228 = por %p226, %p227
    %p229 = scmp.ne.s32.totalorder %s221, %s224
    %p230 = scmp.eq.s32.totalorder %s13, 0
    %p231 = por %p229, %p230
    %p232 = scmp.ne.s32.totalorder %s221, %s224
    %p233 = scmp.eq.s32.totalorder %s18, 1
    %p234 = por %p232, %p233
    %p235 = scmp.ne.s32.totalorder %s224, %s225
    %p236 = scmp.eq.s32.totalorder %s18, 0
    %p237 = por %p235, %p236
    %p238 = scmp.ne.s32.totalorder %s224, %s225
    %p239 = scmp.eq.s32.totalorder %s19, 1
    %p240 = por %p238, %p239
    %p242 = scmp.ne.s32.totalorder %s225, %s241
    %p243 = scmp.eq.s32.totalorder %s19, 0
    %p244 = por %p242, %p243
    %p245 = scmp.le.s32.totalorder 1, %s13
    %p246 = scmp.lt.s32.totalorder %s13, 3
    %p247 = pnand %p245, %p246
    %p248 = pneg %p247
    // Predicated region
    $region9: #{basic_block_bu_forward.2} parent=5 // pred_check
      _
    $region10: #{basic_block_bu_forward.2} parent=5 // pred_check_branch
      %250 = sbr.rel (%p247) target = $region12
    $region11: #{basic_block_bu_forward.2} parent=5 // pred_region
      %s251 = ssub.s32 %s13, 1
      // Predicated region
      $region13: #{basic_block_bu_forward.2} parent=11 // pred_check
        %p252 = pneg %p79
      $region14: #{basic_block_bu_forward.2} parent=11 // pred_check_branch
        %254 = sbr.rel (%p252) target = $region16
      $region15: #{basic_block_bu_forward.2} parent=11 // pred_region
        %p255 = scmp.lt.s32.totalorder %s22, 0
        %s256 = scalar_select %p255, %s22, 0
        %s257 = smul.addr %s256, 8
        %s258 = scalar_lea.vmem %s1, %s257
      $region16: #{basic_block_bu_forward.2} parent=11 // pred_fallthru
        _
      // Predicated region
      $region17: #{basic_block_bu_forward.2} parent=11 // pred_check
        %p259 = pneg %p105
      $region18: #{basic_block_bu_forward.2} parent=11 // pred_check_branch
        %261 = sbr.rel (%p259) target = $region20
      $region19: #{basic_block_bu_forward.2} parent=11 // pred_region
        %p262 = scmp.lt.s32.totalorder %s22, 0
        %s263 = scalar_select %p262, %s22, 0
        %s264 = smul.addr %s263, 8
        %s265 = scalar_lea.vmem %s2, %s264
      $region20: #{basic_block_bu_forward.2} parent=11 // pred_fallthru
        _
      // Predicated region
      $region21: #{basic_block_bu_forward.2} parent=11 // pred_check
        %p266 = pneg %p131
      $region22: #{basic_block_bu_forward.2} parent=11 // pred_check_branch
        %268 = sbr.rel (%p266) target = $region24
      $region23: #{basic_block_bu_forward.2} parent=11 // pred_region
        %p269 = scmp.lt.s32.totalorder %s22, 0
        %s270 = scalar_select %p269, %s22, 0
        %s271 = smul.addr %s270, 8
        %s272 = scalar_lea.vmem %s3, %s271
      $region24: #{basic_block_bu_forward.2} parent=11 // pred_fallthru
        _
      // Predicated region
      $region25: #{basic_block_bu_forward.2} parent=11 // pred_check
        %p273 = pneg %p209
      $region26: #{basic_block_bu_forward.2} parent=11 // pred_check_branch
        %275 = sbr.rel (%p273) target = $region28
      $region27: #{basic_block_bu_forward.2} parent=11 // pred_region
        %p276 = scmp.lt.s32.totalorder %s22, 0
        %s277 = scalar_select %p276, %s22, 0
        %s278 = smul.addr %s277, 8
        %s279 = scalar_lea.vmem %s6, %s278
      $region28: #{basic_block_bu_forward.2} parent=11 // pred_fallthru
        _
    $region12: #{basic_block_bu_forward.2} parent=5 // pred_fallthru
      _
    %p280 = scmp.lt.s32.totalorder %s13, 2
    // Predicated region
    $region29: #{basic_block_bu_forward.2} parent=5 // pred_check
      %p281 = pneg %p280
    $region30: #{basic_block_bu_forward.2} parent=5 // pred_check_branch
      %283 = sbr.rel (%p281) target = $region32
    $region31: #{basic_block_bu_forward.2} parent=5 // pred_region
      // Predicated region
      $region33: #{basic_block_bu_forward.2} parent=31 // pred_check
        %p284 = pneg %p47
      $region34: #{basic_block_bu_forward.2} parent=31 // pred_check_branch
        %286 = sbr.rel (%p284) target = $region36
      $region35: #{basic_block_bu_forward.2} parent=31 // pred_region
        %p287 = scmp.lt.s32.totalorder %s20, 0
        %s288 = scalar_select %p287, %s20, 0
        %p289 = scmp.lt.s32.totalorder %s21, 1
        %s290 = scalar_select %p289, %s21, 1
        %s291 = smul.addr %s288, 2
        %s292 = sadd.s32 %s290, %s291
        %s293 = smul.addr %s292, 8
        %s294 = scalar_lea.vmem %s0, %s293
      $region36: #{basic_block_bu_forward.2} parent=31 // pred_fallthru
        _
      // Predicated region
      $region37: #{basic_block_bu_forward.2} parent=31 // pred_check
        %p295 = pneg %p151
      $region38: #{basic_block_bu_forward.2} parent=31 // pred_check_branch
        %297 = sbr.rel (%p295) target = $region40
      $region39: #{basic_block_bu_forward.2} parent=31 // pred_region
        %p298 = scmp.lt.s32.totalorder %s21, 1
        %s299 = scalar_select %p298, %s21, 1
        %s300 = scalar_lea.vmem %s4, %s299
      $region40: #{basic_block_bu_forward.2} parent=31 // pred_fallthru
        _
      // Predicated region
      $region41: #{basic_block_bu_forward.2} parent=31 // pred_check
        %p301 = pneg %p177
      $region42: #{basic_block_bu_forward.2} parent=31 // pred_check_branch
        %303 = sbr.rel (%p301) target = $region44
      $region43: #{basic_block_bu_forward.2} parent=31 // pred_region
        %p304 = scmp.lt.s32.totalorder %s21, 1
        %s305 = scalar_select %p304, %s21, 1
        %s306 = scalar_lea.vmem %s5, %s305
      $region44: #{basic_block_bu_forward.2} parent=31 // pred_fallthru
        _
    $region32: #{basic_block_bu_forward.2} parent=5 // pred_fallthru
      _
    %p307 = scmp.le.s32.totalorder 1, %s13
    %p308 = scmp.lt.s32.totalorder %s13, 3
    %p309 = pnand %p307, %p308
    %p310 = pneg %p309
    // Predicated region
    $region45: #{basic_block_bu_forward.2} parent=5 // pred_check
      _
    $region46: #{basic_block_bu_forward.2} parent=5 // pred_check_branch
      %312 = sbr.rel (%p309) target = $region48
    $region47: #{basic_block_bu_forward.2} parent=5 // pred_region
      %s313 = ssub.s32 %s13, 1
      %p314 = scmp.lt.s32.totalorder %s22, 0
      %s315 = scalar_select %p314, %s22, 0
      %p316 = scmp.lt.s32.totalorder %s23, 1
      %s317 = scalar_select %p316, %s23, 1
      %s318 = smul.addr %s315, 2
      %s319 = sadd.s32 %s317, %s318
      %s320 = smul.addr %s319, 8
      %s321 = scalar_lea.vmem %s0, %s320
      %p322 = pneg %p53
      %p323 = pneg %p50
      %p324 = scmp.lt.s32.totalorder %s22, 0
      %s325 = scalar_select %p324, %s22, 0
      %s326 = smul.addr %s325, 8
      %s327 = scalar_lea.vmem %s1, %s326
      %p328 = pneg %p79
      %p329 = pneg %p76
      %p330 = scmp.lt.s32.totalorder %s22, 0
      %s331 = scalar_select %p330, %s22, 0
      %s332 = smul.addr %s331, 8
      %s333 = scalar_lea.vmem %s2, %s332
      %p334 = pneg %p105
      %p335 = pneg %p102
      %p336 = scmp.lt.s32.totalorder %s22, 0
      %s337 = scalar_select %p336, %s22, 0
      %s338 = smul.addr %s337, 8
      %s339 = scalar_lea.vmem %s3, %s338
      %p340 = pneg %p131
      %p341 = pneg %p128
      %p342 = scmp.lt.s32.totalorder %s23, 1
      %s343 = scalar_select %p342, %s23, 1
      %s344 = scalar_lea.vmem %s4, %s343
      %p345 = pneg %p157
      %p346 = pneg %p154
      %p347 = scmp.lt.s32.totalorder %s23, 1
      %s348 = scalar_select %p347, %s23, 1
      %s349 = scalar_lea.vmem %s5, %s348
      %p350 = pneg %p183
      %p351 = pneg %p180
      %p352 = scmp.lt.s32.totalorder %s22, 0
      %s353 = scalar_select %p352, %s22, 0
      %s354 = smul.addr %s353, 8
      %s355 = scalar_lea.vmem %s6, %s354
      %p356 = pneg %p209
      %p357 = pneg %p206
      %p358 = pneg %p237
      %p359 = pneg %p234
      %p360 = scmp.lt.s32.totalorder %s22, 0
      %s361 = scalar_select %p360, %s22, 0
      %p362 = scmp.lt.s32.totalorder %s23, 1
      %s363 = scalar_select %p362, %s23, 1
      %s364 = smul.addr %s361, 2
      %s365 = sadd.s32 %s363, %s364
      %s366 = smul.addr %s365, 8
      %s367 = scalar_lea.vmem %s7, %s366
      %p368 = scmp.lt.s32.totalorder %s22, 0
      %s369 = scalar_select %p368, %s22, 0
      %p370 = scmp.lt.s32.totalorder %s23, 1
      %s371 = scalar_select %p370, %s23, 1
      %s372 = smul.addr %s369, 2
      %s373 = sadd.s32 %s371, %s372
      %s374 = smul.addr %s373, 8
      %s375 = scalar_lea.vmem %s0, %s374
      %p376 = scmp.lt.s32.totalorder %s22, 0
      %s377 = scalar_select %p376, %s22, 0
      %s378 = smul.addr %s377, 8
      %s379 = scalar_lea.vmem %s1, %s378
      %p380 = scmp.lt.s32.totalorder %s22, 0
      %s381 = scalar_select %p380, %s22, 0
      %s382 = smul.addr %s381, 8
      %s383 = scalar_lea.vmem %s2, %s382
      %p384 = scmp.lt.s32.totalorder %s22, 0
      %s385 = scalar_select %p384, %s22, 0
      %s386 = smul.addr %s385, 8
      %s387 = scalar_lea.vmem %s3, %s386
      %p388 = scmp.lt.s32.totalorder %s23, 1
      %s389 = scalar_select %p388, %s23, 1
      %s390 = scalar_lea.vmem %s4, %s389
      %p391 = scmp.lt.s32.totalorder %s23, 1
      %s392 = scalar_select %p391, %s23, 1
      %s393 = scalar_lea.vmem %s5, %s392
      %p394 = scmp.lt.s32.totalorder %s22, 0
      %s395 = scalar_select %p394, %s22, 0
      %s396 = smul.addr %s395, 8
      %s397 = scalar_lea.vmem %s6, %s396
      %p398 = scmp.lt.s32.totalorder %s22, 0
      %s399 = scalar_select %p398, %s22, 0
      %p400 = scmp.lt.s32.totalorder %s23, 1
      %s401 = scalar_select %p400, %s23, 1
      %s402 = smul.addr %s399, 2
      %s403 = sadd.s32 %s401, %s402
      %s404 = smul.addr %s403, 8
      %s405 = scalar_lea.vmem %s7, %s404
      %v406 = vld [vmem:[%s375] sm:$0xff]
      %v407 = vld [vmem:[%s379] sm:$0xff]
      %409 = vset.pattern.permute.xlu0 0
      %410 = vperm.xlu0 %409, %v407
      %v411 = vpop.permute.xlu0 %410
      %v413 = vmul.f32 %v406, %v411
      %v414 = vld [vmem:[%s383] sm:$0xff]
      %416 = vset.pattern.permute.xlu0 0
      %417 = vperm.xlu0 %416, %v414
      %v418 = vpop.permute.xlu0 %417
      %v420 = vadd.f32 %v413, %v418
      %v421 = vmax.f32 %v420, 0.0
      %v422 = vld [vmem:[%s387] sm:$0xff]
      %v423 = vld [vmem:[%s390] sm:$0x1]
      %425 = vset.pattern.permute.xlu0 0
      %426 = vperm.xlu0 %425, %v422
      %v427 = vpop.permute.xlu0 %426
      %v430 = vlaneseq
      %v431 = vshrl.u32 %v430, 7
      %v432 = vsub.s32 0, %v431
      %v433 = vrot.slane %v423, %v432
      %v435 = vmul.f32 %v427, %v433
      %v436 = vld [vmem:[%s393] sm:$0x1]
      %v438 = vlaneseq
      %v439 = vshrl.u32 %v438, 7
      %v440 = vsub.s32 0, %v439
      %v441 = vrot.slane %v436, %v440
      %v443 = vadd.f32 %v435, %v441
      %v444 = vsub.f32 1.0, %v443
      %v445 = vmul.f32 %v421, %v444
      %v446 = vld [vmem:[%s397] sm:$0xff]
      %448 = vset.pattern.permute.xlu0 0
      %449 = vperm.xlu0 %448, %v446
      %v450 = vpop.permute.xlu0 %449
      %v452 = vmul.f32 %v445, %v450
      %453 = vst [vmem:[%s405] sm:$0xff] %v452
      %p454 = scmp.lt.s32.totalorder %s22, 0
      %s455 = scalar_select %p454, %s22, 0
      %p456 = scmp.lt.s32.totalorder %s23, 1
      %s457 = scalar_select %p456, %s23, 1
      %s458 = smul.addr %s455, 2
      %s459 = sadd.s32 %s457, %s458
      %s460 = smul.addr %s459, 8
      %s461 = scalar_lea.vmem %s7, %s460
      // Predicated region
      $region49: #{basic_block_bu_forward.2} parent=47 // pred_check
        %p462 = pneg %p234
      $region50: #{basic_block_bu_forward.2} parent=47 // pred_check_branch
        %464 = sbr.rel (%p462) target = $region52
      $region51: #{basic_block_bu_forward.2} parent=47 // pred_region
        _
      $region52: #{basic_block_bu_forward.2} parent=47 // pred_fallthru
        _
    $region48: #{basic_block_bu_forward.2} parent=5 // pred_fallthru
      _
    %p465 = scmp.le.s32.totalorder 2, %s13
    // Predicated region
    $region53: #{basic_block_bu_forward.2} parent=5 // pred_check
      %p466 = pneg %p465
    $region54: #{basic_block_bu_forward.2} parent=5 // pred_check_branch
      %468 = sbr.rel (%p466) target = $region56
    $region55: #{basic_block_bu_forward.2} parent=5 // pred_region
      %s469 = ssub.s32 %s13, 2
      // Predicated region
      $region57: #{basic_block_bu_forward.2} parent=55 // pred_check
        %p470 = pneg %p240
      $region58: #{basic_block_bu_forward.2} parent=55 // pred_check_branch
        %472 = sbr.rel (%p470) target = $region60
      $region59: #{basic_block_bu_forward.2} parent=55 // pred_region
        %p473 = scmp.lt.s32.totalorder %s24, 0
        %s474 = scalar_select %p473, %s24, 0
        %p475 = scmp.lt.s32.totalorder %s25, 1
        %s476 = scalar_select %p475, %s25, 1
        %s477 = smul.addr %s474, 2
        %s478 = sadd.s32 %s476, %s477
        %s479 = smul.addr %s478, 8
        %s480 = scalar_lea.vmem %s7, %s479
      $region60: #{basic_block_bu_forward.2} parent=55 // pred_fallthru
        _
    $region56: #{basic_block_bu_forward.2} parent=5 // pred_fallthru
      _
  $region6: #{basic_block_bu_forward.2} parent=0 // loop_footer
    %s17 = sadd.s32 1, %s13
  $region7: #{basic_block_bu_forward.2} parent=0 // loop_footer_branch
    %12 = sbr.rel target = $region3
  $region8: #{basic_block_bu_forward.2} parent=0 // loop_exit
    _

</llo_original>
